<compile_context>
chip_gen: v6e
topology: v6e:2x2x1
jax: 0.10.0
libtpu: 0.0.40
codegen_flags: <defaults>
</compile_context>

<pallas_src>
import functools

import jax
import jax.numpy as jnp
from jax.experimental import pallas as pl
from jax.experimental.pallas import tpu as pltpu

EPS = 3.0            # torch.nn.BatchNorm2d(64, 3) -> eps = 3
NUM_FEATURES = 64

_PAR2 = pltpu.CompilerParams(dimension_semantics=("parallel", "parallel"))


# ---------------------------------------------------------------------------
# Fused single-pass kernel (whole tensor resident in VMEM).
# ---------------------------------------------------------------------------
def _fused_kernel(x_ref, w_ref, b_ref, o_ref, *, eps):
    x = x_ref[...].astype(jnp.float32)                        # (n, c, hw)
    n, _, hw = x.shape
    inv_count = 1.0 / float(n * hw)
    mean = jnp.sum(jnp.sum(x, axis=2, keepdims=True), axis=0,
                   keepdims=True) * inv_count                 # (1, c, 1)
    ctr = x - mean
    var = jnp.sum(jnp.sum(ctr * ctr, axis=2, keepdims=True), axis=0,
                  keepdims=True) * inv_count                  # biased variance
    scale = w_ref[...] * jax.lax.rsqrt(var + eps)             # (1, c, 1)
    y = ctr * scale + b_ref[...]
    o_ref[...] = (y * jax.nn.sigmoid(y)).astype(o_ref.dtype)


# ---------------------------------------------------------------------------
# Pass 1: per-(batch, spatial-tile) per-channel partial sums.
# Lane-dense (c,128) partials accumulated per 128-lane slab on the VPU.
# ---------------------------------------------------------------------------
def _stats_kernel(x_ref, sum_ref, sumsq_ref, *, ts, valid, need_mask):
    c = x_ref.shape[1]
    s = jnp.zeros((c, 128), jnp.float32)
    ss = jnp.zeros((c, 128), jnp.float32)
    if need_mask:
        lane = jax.lax.broadcasted_iota(jnp.int32, (c, 128), 1)
        base = pl.program_id(1) * ts
    for j in range(ts // 128):
        blk = x_ref[0, :, j * 128:(j + 1) * 128].astype(jnp.float32)  # (c,128)
        if need_mask:
            blk = jnp.where(base + (j * 128) + lane < valid, blk, 0.0)
        s = s + blk
        ss = ss + blk * blk
    sum_ref[0, 0] = s
    sumsq_ref[0, 0] = ss


# ---------------------------------------------------------------------------
# Pass 2: fold scale/shift from the reduced sums, normalize, SiLU.
# ---------------------------------------------------------------------------
def _apply_kernel(x_ref, sum_ref, sumsq_ref, w_ref, b_ref, o_ref, *,
                  inv_count, eps):
    mean = sum_ref[...] * inv_count                           # (1, c, 1)
    var = sumsq_ref[...] * inv_count - mean * mean            # biased variance
    scale = w_ref[...] * jax.lax.rsqrt(var + eps)
    shift = b_ref[...] - mean * scale
    x = x_ref[...].astype(jnp.float32)                        # (1, c, ts)
    y = x * scale + shift
    o_ref[...] = (y * jax.nn.sigmoid(y)).astype(o_ref.dtype)


# ---------------------------------------------------------------------------
# Tiling helpers / wrappers.
# ---------------------------------------------------------------------------
def _pick_spatial_tile(s, cap):
    """Largest lane-dense (multiple-of-128) tile <= cap for spatial size s >= 128."""
    cap = max(128, cap - cap % 128)
    if s <= cap:
        return s - s % 128 if s % 128 else s
    for ts in range(cap, 127, -128):       # prefer an exact divisor: no masked tail
        if s % ts == 0:
            return ts
    return cap                             # ragged tail, masked in the stats pass


def _bn_silu_two_pass(x3, w_col, b_col, eps, hw_valid, tile_cap):
    n, c, s = x3.shape
    ts = _pick_spatial_tile(s, tile_cap)
    num_t = pl.cdiv(s, ts)
    need_mask = (s % ts) != 0

    # ---- pass 1: lane-dense per-channel partial sums -----------------------
    stats_kernel = functools.partial(_stats_kernel, ts=ts, valid=hw_valid,
                                     need_mask=need_mask)
    sum_p, sumsq_p = pl.pallas_call(
        stats_kernel,
        out_shape=(jax.ShapeDtypeStruct((n, num_t, c, 128), jnp.float32),
                   jax.ShapeDtypeStruct((n, num_t, c, 128), jnp.float32)),
        grid=(n, num_t),
        in_specs=[pl.BlockSpec((1, c, ts), lambda i, t: (i, 0, t))],
        out_specs=(pl.BlockSpec((1, 1, c, 128), lambda i, t: (i, t, 0, 0)),
                   pl.BlockSpec((1, 1, c, 128), lambda i, t: (i, t, 0, 0))),
        compiler_params=_PAR2,
    )(x3)

    # Tiny reduction of the partials to per-channel totals, fed to pass 2.
    sum_c = jnp.sum(sum_p, axis=(0, 1, 3)).reshape(1, c, 1)
    sumsq_c = jnp.sum(sumsq_p, axis=(0, 1, 3)).reshape(1, c, 1)

    # ---- pass 2: normalize + SiLU (scale/shift folded in-kernel) -----------
    apply_kernel = functools.partial(_apply_kernel,
                                     inv_count=1.0 / float(n * hw_valid),
                                     eps=float(eps))
    tiny = pl.BlockSpec((1, c, 1), lambda i, t: (0, 0, 0))
    return pl.pallas_call(
        apply_kernel,
        out_shape=jax.ShapeDtypeStruct((n, c, s), x3.dtype),
        grid=(n, num_t),
        in_specs=[pl.BlockSpec((1, c, ts), lambda i, t: (i, 0, t)),
                  tiny, tiny, tiny, tiny],
        out_specs=pl.BlockSpec((1, c, ts), lambda i, t: (i, 0, t)),
        compiler_params=_PAR2,
    )(x3, sum_c, sumsq_c, w_col, b_col)


def bn_silu(x_nchw, weight, bias, eps=EPS, *, tile_cap=8192,
            fused_limit_bytes=8 * 1024 * 1024):
    """Training-mode BatchNorm2d(eps) + SiLU on an NCHW tensor."""
    n, c, h, w = x_nchw.shape
    assert c % 8 == 0, "channel count must be a multiple of 8 sublanes"
    hw = h * w
    x3 = x_nchw.reshape(n, c, hw)            # free view: C on sublanes, HW on lanes
    w_col = weight.astype(jnp.float32).reshape(1, c, 1)
    b_col = bias.astype(jnp.float32).reshape(1, c, 1)

    nbytes = x_nchw.size * x_nchw.dtype.itemsize
    if nbytes <= fused_limit_bytes:
        # Fused single pass: 2 HBM passes over x instead of 3, one launch.
        full = pl.BlockSpec(memory_space=pltpu.MemorySpace.VMEM)
        out3 = pl.pallas_call(
            functools.partial(_fused_kernel, eps=float(eps)),
            out_shape=jax.ShapeDtypeStruct((n, c, hw), x_nchw.dtype),
            in_specs=[full, full, full],
            out_specs=full,
        )(x3, w_col, b_col)
        return out3.reshape(n, c, h, w)

    if hw < 128:
        # TODO(synk): rare huge-batch / tiny-spatial case -- pad the lane axis to
        # 128 (zeros don't perturb the sums) instead of a dedicated batch-folded
        # layout; the pad/slice copies only hit this fallback.
        x3p = jnp.pad(x3, ((0, 0), (0, 0), (0, 128 - hw)))
        out3 = _bn_silu_two_pass(x3p, w_col, b_col, eps, hw, tile_cap)[:, :, :hw]
    else:
        out3 = _bn_silu_two_pass(x3, w_col, b_col, eps, hw, tile_cap)
    return out3.reshape(n, c, h, w)          # free view back to NCHW


def reference(x, weight, bias, eps=EPS):
    # pure-JAX training-mode BN + SiLU for sanity checking
    mean = jnp.mean(x, axis=(0, 2, 3), keepdims=True)
    var = jnp.mean((x - mean) ** 2, axis=(0, 2, 3), keepdims=True)
    y = (x - mean) * jax.lax.rsqrt(var + eps)
    y = y * weight.reshape(1, -1, 1, 1) + bias.reshape(1, -1, 1, 1)
    return y * jax.nn.sigmoid(y)


if __name__ == "__main__":
    key = jax.random.PRNGKey(0)
    weight = jnp.ones((NUM_FEATURES,), dtype=jnp.float32)    # torch defaults
    bias = jnp.zeros((NUM_FEATURES,), dtype=jnp.float32)

    # (1) small NCHW input (batch=2, C=64, 16x16) -> fused single-pass path.
    x = jax.random.normal(key, (2, NUM_FEATURES, 16, 16), dtype=jnp.float32)
    out = jax.block_until_ready(jax.jit(bn_silu)(x, weight, bias))
    assert out.shape == x.shape and out.dtype == x.dtype
    assert jnp.allclose(out, reference(x, weight, bias), atol=1e-4, rtol=1e-4)

    # (2) same input forced through the tiled two-pass path that large tensors
    #     take (streamed stats kernel + apply kernel).
    two_pass = jax.jit(functools.partial(bn_silu, fused_limit_bytes=0))
    out2 = jax.block_until_ready(two_pass(x, weight, bias))
    assert jnp.allclose(out2, reference(x, weight, bias), atol=1e-4, rtol=1e-4)

    # (3) ragged spatial size (16x14 -> hw=224, not a multiple of 128) through
    #     the masked cdiv tiling of the two-pass path.
    xr = jax.random.normal(jax.random.PRNGKey(1), (2, NUM_FEATURES, 16, 14),
                           dtype=jnp.float32)
    out3 = jax.block_until_ready(two_pass(xr, weight, bias))
    assert jnp.allclose(out3, reference(xr, weight, bias), atol=1e-4, rtol=1e-4)

    print("KERNEL_OK")
</pallas_src>

<mosaic_0001>
module attributes {stable_mosaic.version = 11 : i64} {
  func.func @_fused_kernel(%arg0: memref<2x64x256xf32, #tpu.memory_space<vmem>>, %arg1: memref<1x64x1xf32, #tpu.memory_space<vmem>>, %arg2: memref<1x64x1xf32, #tpu.memory_space<vmem>>, %arg3: memref<2x64x256xf32, #tpu.memory_space<vmem>>) attributes {dimension_semantics = [], scalar_prefetch = 0 : i64, scratch_operands = 0 : i64, tpu.core_type = #tpu.core_type<tc>} {
    %c0 = arith.constant 0 : index
    %c0_0 = arith.constant 0 : index
    %c0_1 = arith.constant 0 : index
    %0 = vector.load %arg0[%c0, %c0_0, %c0_1] : memref<2x64x256xf32, #tpu.memory_space<vmem>>, vector<2x64x256xf32>
    %cst = arith.constant dense<0.000000e+00> : vector<2x64xf32>
    %1 = vector.multi_reduction <add>, %0, %cst [2] : vector<2x64x256xf32> to vector<2x64xf32>
    %2 = vector.shape_cast %1 : vector<2x64xf32> to vector<2x64x1xf32>
    %cst_2 = arith.constant dense<0.000000e+00> : vector<64x1xf32>
    %3 = vector.multi_reduction <add>, %2, %cst_2 [0] : vector<2x64x1xf32> to vector<64x1xf32>
    %4 = vector.shape_cast %3 : vector<64x1xf32> to vector<1x64x1xf32>
    %cst_3 = arith.constant 0.001953125 : f32
    %5 = vector.broadcast %cst_3 : f32 to vector<1x64x1xf32>
    %6 = arith.mulf %4, %5 : vector<1x64x1xf32>
    %7 = vector.broadcast %6 : vector<1x64x1xf32> to vector<2x64x256xf32>
    %8 = arith.subf %0, %7 : vector<2x64x256xf32>
    %9 = arith.mulf %8, %8 : vector<2x64x256xf32>
    %cst_4 = arith.constant dense<0.000000e+00> : vector<2x64xf32>
    %10 = vector.multi_reduction <add>, %9, %cst_4 [2] : vector<2x64x256xf32> to vector<2x64xf32>
    %11 = vector.shape_cast %10 : vector<2x64xf32> to vector<2x64x1xf32>
    %cst_5 = arith.constant dense<0.000000e+00> : vector<64x1xf32>
    %12 = vector.multi_reduction <add>, %11, %cst_5 [0] : vector<2x64x1xf32> to vector<64x1xf32>
    %13 = vector.shape_cast %12 : vector<64x1xf32> to vector<1x64x1xf32>
    %cst_6 = arith.constant 0.001953125 : f32
    %14 = vector.broadcast %cst_6 : f32 to vector<1x64x1xf32>
    %15 = arith.mulf %13, %14 : vector<1x64x1xf32>
    %c0_7 = arith.constant 0 : index
    %c0_8 = arith.constant 0 : index
    %c0_9 = arith.constant 0 : index
    %16 = vector.load %arg1[%c0_7, %c0_8, %c0_9] : memref<1x64x1xf32, #tpu.memory_space<vmem>>, vector<1x64x1xf32>
    %cst_10 = arith.constant 3.000000e+00 : f32
    %17 = vector.broadcast %cst_10 : f32 to vector<1x64x1xf32>
    %18 = arith.addf %15, %17 : vector<1x64x1xf32>
    %19 = math.rsqrt %18 : vector<1x64x1xf32>
    %20 = arith.mulf %16, %19 : vector<1x64x1xf32>
    %21 = vector.broadcast %20 : vector<1x64x1xf32> to vector<2x64x256xf32>
    %22 = arith.mulf %8, %21 : vector<2x64x256xf32>
    %c0_11 = arith.constant 0 : index
    %c0_12 = arith.constant 0 : index
    %c0_13 = arith.constant 0 : index
    %23 = vector.load %arg2[%c0_11, %c0_12, %c0_13] : memref<1x64x1xf32, #tpu.memory_space<vmem>>, vector<1x64x1xf32>
    %24 = vector.broadcast %23 : vector<1x64x1xf32> to vector<2x64x256xf32>
    %25 = arith.addf %22, %24 : vector<2x64x256xf32>
    %26 = arith.negf %25 : vector<2x64x256xf32>
    %27 = math.exp %26 : vector<2x64x256xf32>
    %cst_14 = arith.constant 1.000000e+00 : f32
    %28 = vector.broadcast %cst_14 : f32 to vector<2x64x256xf32>
    %29 = arith.addf %28, %27 : vector<2x64x256xf32>
    %30 = arith.divf %28, %29 : vector<2x64x256xf32>
    %31 = arith.mulf %25, %30 : vector<2x64x256xf32>
    %c0_15 = arith.constant 0 : index
    %c0_16 = arith.constant 0 : index
    %c0_17 = arith.constant 0 : index
    %32 = vector.load %arg3[%c0_15, %c0_16, %c0_17] : memref<2x64x256xf32, #tpu.memory_space<vmem>>, vector<2x64x256xf32>
    tpu.vector_store %arg3[%c0_15, %c0_16, %c0_17], %31 {strides = array<i32>} : memref<2x64x256xf32, #tpu.memory_space<vmem>>, vector<2x64x256xf32>,
    return
  }
}

</mosaic_0001>

<llo_original>
// kernel: bn_silu.1
$region0: #{bn_silu.1}
  #allocation0 [shape = 'u32[]', space=smem, size = 0x4, offset = 0x4, fixed_abs, tag = 'smem constant byte address 0x4 - core index']
  #allocation1 [shape = 'u32[144,128]{1,0:T(1,128)}', space=vmem, size = 0x12000, scoped, tag = 'internal scratch']
  %s0 = inlined_call_operand.vmem [shape: f32[2,64,256], index: 0, kind: input, shape index: {}]
  %s1 = inlined_call_operand.vmem [shape: f32[1,64,1], index: 1, kind: input, shape index: {}]
  %s2 = inlined_call_operand.vmem [shape: f32[1,64,1], index: 2, kind: input, shape index: {}]
  %s3 = inlined_call_operand.vmem [shape: f32[2,64,256], index: 3, kind: output, shape index: {}]
  %s4 = sld [smem:[#allocation0]]
  $region22: #{bn_silu.1} parent=0
    _
  %s6 = ssub.s32 1, %s4
  %s7 = scalar_select 0, %s6, %s4
  // Predicated region
  $region2: #{bn_silu.1} parent=0 // pred_check
    _
  $region3: #{bn_silu.1} parent=0 // pred_check_branch
    %9 = sbr.rel (0) target = $region5
  $region4: #{bn_silu.1} parent=0 // pred_region
    _
  $region5: #{bn_silu.1} parent=0 // pred_fallthru
    _
  // Predicated region
  $region6: #{bn_silu.1} parent=0 // pred_check
    _
  $region7: #{bn_silu.1} parent=0 // pred_check_branch
    %11 = sbr.rel (0) target = $region9
  $region8: #{bn_silu.1} parent=0 // pred_region
    _
  $region9: #{bn_silu.1} parent=0 // pred_fallthru
    _
  // Predicated region
  $region10: #{bn_silu.1} parent=0 // pred_check
    _
  $region11: #{bn_silu.1} parent=0 // pred_check_branch
    %13 = sbr.rel (0) target = $region13
  $region12: #{bn_silu.1} parent=0 // pred_region
    _
  $region13: #{bn_silu.1} parent=0 // pred_fallthru
    _
  %v14 = vld [vmem:[%s0] sm:$0xff]
  %v15 = vld [vmem:[%s0 + $0x8] sm:$0xff]
  %v16 = vld [vmem:[%s0 + $0x10] sm:$0xff]
  %v17 = vld [vmem:[%s0 + $0x18] sm:$0xff]
  %v18 = vld [vmem:[%s0 + $0x20] sm:$0xff]
  %v19 = vld [vmem:[%s0 + $0x28] sm:$0xff]
  %v20 = vld [vmem:[%s0 + $0x30] sm:$0xff]
  %v21 = vld [vmem:[%s0 + $0x38] sm:$0xff]
  %v22 = vld [vmem:[%s0 + $0x40] sm:$0xff]
  %v23 = vld [vmem:[%s0 + $0x48] sm:$0xff]
  %v24 = vld [vmem:[%s0 + $0x50] sm:$0xff]
  %v25 = vld [vmem:[%s0 + $0x58] sm:$0xff]
  %v26 = vld [vmem:[%s0 + $0x60] sm:$0xff]
  %v27 = vld [vmem:[%s0 + $0x68] sm:$0xff]
  %v28 = vld [vmem:[%s0 + $0x70] sm:$0xff]
  %v29 = vld [vmem:[%s0 + $0x78] sm:$0xff]
  %v30 = vld [vmem:[%s0 + $0x80] sm:$0xff]
  %v31 = vld [vmem:[%s0 + $0x88] sm:$0xff]
  %v32 = vld [vmem:[%s0 + $0x90] sm:$0xff]
  %v33 = vld [vmem:[%s0 + $0x98] sm:$0xff]
  %v34 = vld [vmem:[%s0 + $0xa0] sm:$0xff]
  %v35 = vld [vmem:[%s0 + $0xa8] sm:$0xff]
  %v36 = vld [vmem:[%s0 + $0xb0] sm:$0xff]
  %v37 = vld [vmem:[%s0 + $0xb8] sm:$0xff]
  %v38 = vld [vmem:[%s0 + $0xc0] sm:$0xff]
  %v39 = vld [vmem:[%s0 + $0xc8] sm:$0xff]
  %v40 = vld [vmem:[%s0 + $0xd0] sm:$0xff]
  %v41 = vld [vmem:[%s0 + $0xd8] sm:$0xff]
  %v42 = vld [vmem:[%s0 + $0xe0] sm:$0xff]
  %v43 = vld [vmem:[%s0 + $0xe8] sm:$0xff]
  %v44 = vld [vmem:[%s0 + $0xf0] sm:$0xff]
  %v45 = vld [vmem:[%s0 + $0xf8] sm:$0xff]
  %v46 = vadd.f32 %v14, %v15
  %47 = vadd.xlane.f32.xlu0 %v46
  %v48 = vpop.xlane.xlu0 %47
  %v49 = vadd.f32 %v16, %v17
  %50 = vadd.xlane.f32.xlu0 %v49
  %v51 = vpop.xlane.xlu0 %50
  %v52 = vadd.f32 %v18, %v19
  %53 = vadd.xlane.f32.xlu0 %v52
  %v54 = vpop.xlane.xlu0 %53
  %v55 = vadd.f32 %v20, %v21
  %56 = vadd.xlane.f32.xlu0 %v55
  %v57 = vpop.xlane.xlu0 %56
  %v58 = vadd.f32 %v22, %v23
  %59 = vadd.xlane.f32.xlu0 %v58
  %v60 = vpop.xlane.xlu0 %59
  %v61 = vadd.f32 %v24, %v25
  %62 = vadd.xlane.f32.xlu0 %v61
  %v63 = vpop.xlane.xlu0 %62
  %v64 = vadd.f32 %v26, %v27
  %65 = vadd.xlane.f32.xlu0 %v64
  %v66 = vpop.xlane.xlu0 %65
  %v67 = vadd.f32 %v28, %v29
  %68 = vadd.xlane.f32.xlu0 %v67
  %v69 = vpop.xlane.xlu0 %68
  %v70 = vadd.f32 %v30, %v31
  %71 = vadd.xlane.f32.xlu0 %v70
  %v72 = vpop.xlane.xlu0 %71
  %v73 = vadd.f32 %v32, %v33
  %74 = vadd.xlane.f32.xlu0 %v73
  %v75 = vpop.xlane.xlu0 %74
  %v76 = vadd.f32 %v34, %v35
  %77 = vadd.xlane.f32.xlu0 %v76
  %v78 = vpop.xlane.xlu0 %77
  %v79 = vadd.f32 %v36, %v37
  %80 = vadd.xlane.f32.xlu0 %v79
  %v81 = vpop.xlane.xlu0 %80
  %v82 = vadd.f32 %v38, %v39
  %83 = vadd.xlane.f32.xlu0 %v82
  %v84 = vpop.xlane.xlu0 %83
  %v85 = vadd.f32 %v40, %v41
  %86 = vadd.xlane.f32.xlu0 %v85
  %v87 = vpop.xlane.xlu0 %86
  %v88 = vadd.f32 %v42, %v43
  %89 = vadd.xlane.f32.xlu0 %v88
  %v90 = vpop.xlane.xlu0 %89
  %v91 = vadd.f32 %v44, %v45
  %92 = vadd.xlane.f32.xlu0 %v91
  %v93 = vpop.xlane.xlu0 %92
  %v94 = vadd.f32 %v48, %v72
  %v95 = vadd.f32 %v51, %v75
  %v96 = vadd.f32 %v54, %v78
  %v97 = vadd.f32 %v57, %v81
  %v98 = vadd.f32 %v60, %v84
  %v99 = vadd.f32 %v63, %v87
  %v100 = vadd.f32 %v66, %v90
  %v101 = vadd.f32 %v69, %v93
  %v102 = vmul.f32 %v94, 0.001953125
  %v103 = vmul.f32 %v95, 0.001953125
  %v104 = vmul.f32 %v96, 0.001953125
  %v105 = vmul.f32 %v97, 0.001953125
  %v106 = vmul.f32 %v98, 0.001953125
  %v107 = vmul.f32 %v99, 0.001953125
  %v108 = vmul.f32 %v100, 0.001953125
  %v109 = vmul.f32 %v101, 0.001953125
  %v110 = vsub.f32 %v14, %v102
  %v111 = vsub.f32 %v15, %v102
  %v112 = vsub.f32 %v16, %v103
  %v113 = vsub.f32 %v17, %v103
  %v114 = vsub.f32 %v18, %v104
  %v115 = vsub.f32 %v19, %v104
  %v116 = vsub.f32 %v20, %v105
  %v117 = vsub.f32 %v21, %v105
  %v118 = vsub.f32 %v22, %v106
  %v119 = vsub.f32 %v23, %v106
  %v120 = vsub.f32 %v24, %v107
  %v121 = vsub.f32 %v25, %v107
  %v122 = vsub.f32 %v26, %v108
  %v123 = vsub.f32 %v27, %v108
  %v124 = vsub.f32 %v28, %v109
  %v125 = vsub.f32 %v29, %v109
  %v126 = vsub.f32 %v30, %v102
  %v127 = vsub.f32 %v31, %v102
  %v128 = vsub.f32 %v32, %v103
  %v129 = vsub.f32 %v33, %v103
  %v130 = vsub.f32 %v34, %v104
  %v131 = vsub.f32 %v35, %v104
  %v132 = vsub.f32 %v36, %v105
  %v133 = vsub.f32 %v37, %v105
  %v134 = vsub.f32 %v38, %v106
  %v135 = vsub.f32 %v39, %v106
  %v136 = vsub.f32 %v40, %v107
  %v137 = vsub.f32 %v41, %v107
  %v138 = vsub.f32 %v42, %v108
  %v139 = vsub.f32 %v43, %v108
  %v140 = vsub.f32 %v44, %v109
  %v141 = vsub.f32 %v45, %v109
  %v142 = vmul.f32 %v110, %v110
  %v143 = vmul.f32 %v111, %v111
  %v144 = vmul.f32 %v112, %v112
  %v145 = vmul.f32 %v113, %v113
  %v146 = vmul.f32 %v114, %v114
  %v147 = vmul.f32 %v115, %v115
  %v148 = vmul.f32 %v116, %v116
  %v149 = vmul.f32 %v117, %v117
  %v150 = vmul.f32 %v118, %v118
  %v151 = vmul.f32 %v119, %v119
  %v152 = vmul.f32 %v120, %v120
  %v153 = vmul.f32 %v121, %v121
  %v154 = vmul.f32 %v122, %v122
  %v155 = vmul.f32 %v123, %v123
  %v156 = vmul.f32 %v124, %v124
  %v157 = vmul.f32 %v125, %v125
  %v158 = vmul.f32 %v126, %v126
  %v159 = vmul.f32 %v127, %v127
  %v160 = vmul.f32 %v128, %v128
  %v161 = vmul.f32 %v129, %v129
  %v162 = vmul.f32 %v130, %v130
  %v163 = vmul.f32 %v131, %v131
  %v164 = vmul.f32 %v132, %v132
  %v165 = vmul.f32 %v133, %v133
  %v166 = vmul.f32 %v134, %v134
  %v167 = vmul.f32 %v135, %v135
  %v168 = vmul.f32 %v136, %v136
  %v169 = vmul.f32 %v137, %v137
  %v170 = vmul.f32 %v138, %v138
  %v171 = vmul.f32 %v139, %v139
  %v172 = vmul.f32 %v140, %v140
  %v173 = vmul.f32 %v141, %v141
  %v174 = vadd.f32 %v142, %v143
  %175 = vadd.xlane.f32.xlu0 %v174
  %v176 = vpop.xlane.xlu0 %175
  %v177 = vadd.f32 %v144, %v145
  %178 = vadd.xlane.f32.xlu0 %v177
  %v179 = vpop.xlane.xlu0 %178
  %v180 = vadd.f32 %v146, %v147
  %181 = vadd.xlane.f32.xlu0 %v180
  %v182 = vpop.xlane.xlu0 %181
  %v183 = vadd.f32 %v148, %v149
  %184 = vadd.xlane.f32.xlu0 %v183
  %v185 = vpop.xlane.xlu0 %184
  %v186 = vadd.f32 %v150, %v151
  %187 = vadd.xlane.f32.xlu0 %v186
  %v188 = vpop.xlane.xlu0 %187
  %v189 = vadd.f32 %v152, %v153
  %190 = vadd.xlane.f32.xlu0 %v189
  %v191 = vpop.xlane.xlu0 %190
  %v192 = vadd.f32 %v154, %v155
  %193 = vadd.xlane.f32.xlu0 %v192
  %v194 = vpop.xlane.xlu0 %193
  %v195 = vadd.f32 %v156, %v157
  %196 = vadd.xlane.f32.xlu0 %v195
  %v197 = vpop.xlane.xlu0 %196
  %v198 = vadd.f32 %v158, %v159
  %199 = vadd.xlane.f32.xlu0 %v198
  %v200 = vpop.xlane.xlu0 %199
  %v201 = vadd.f32 %v160, %v161
  %202 = vadd.xlane.f32.xlu0 %v201
  %v203 = vpop.xlane.xlu0 %202
  %v204 = vadd.f32 %v162, %v163
  %205 = vadd.xlane.f32.xlu0 %v204
  %v206 = vpop.xlane.xlu0 %205
  %v207 = vadd.f32 %v164, %v165
  %208 = vadd.xlane.f32.xlu0 %v207
  %v209 = vpop.xlane.xlu0 %208
  %v210 = vadd.f32 %v166, %v167
  %211 = vadd.xlane.f32.xlu0 %v210
  %v212 = vpop.xlane.xlu0 %211
  %v213 = vadd.f32 %v168, %v169
  %214 = vadd.xlane.f32.xlu0 %v213
  %v215 = vpop.xlane.xlu0 %214
  %v216 = vadd.f32 %v170, %v171
  %217 = vadd.xlane.f32.xlu0 %v216
  %v218 = vpop.xlane.xlu0 %217
  %v219 = vadd.f32 %v172, %v173
  %220 = vadd.xlane.f32.xlu0 %v219
  %v221 = vpop.xlane.xlu0 %220
  %v222 = vadd.f32 %v176, %v200
  %v223 = vadd.f32 %v179, %v203
  %v224 = vadd.f32 %v182, %v206
  %v225 = vadd.f32 %v185, %v209
  %v226 = vadd.f32 %v188, %v212
  %v227 = vadd.f32 %v191, %v215
  %v228 = vadd.f32 %v194, %v218
  %v229 = vadd.f32 %v197, %v221
  %v230 = vmul.f32 %v222, 0.001953125
  %v231 = vmul.f32 %v223, 0.001953125
  %v232 = vmul.f32 %v224, 0.001953125
  %v233 = vmul.f32 %v225, 0.001953125
  %v234 = vmul.f32 %v226, 0.001953125
  %v235 = vmul.f32 %v227, 0.001953125
  %v236 = vmul.f32 %v228, 0.001953125
  %v237 = vmul.f32 %v229, 0.001953125
  %v238 = vld [vmem:[%s1] sm:$0xff]
  %v239 = vld [vmem:[%s1 + $0x8] sm:$0xff]
  %v240 = vld [vmem:[%s1 + $0x10] sm:$0xff]
  %v241 = vld [vmem:[%s1 + $0x18] sm:$0xff]
  %v242 = vld [vmem:[%s1 + $0x20] sm:$0xff]
  %v243 = vld [vmem:[%s1 + $0x28] sm:$0xff]
  %v244 = vld [vmem:[%s1 + $0x30] sm:$0xff]
  %v245 = vld [vmem:[%s1 + $0x38] sm:$0xff]
  %v246 = vadd.f32 %v230, 3.0
  %v247 = vadd.f32 %v231, 3.0
  %v248 = vadd.f32 %v232, 3.0
  %v249 = vadd.f32 %v233, 3.0
  %v250 = vadd.f32 %v234, 3.0
  %v251 = vadd.f32 %v235, 3.0
  %v252 = vadd.f32 %v236, 3.0
  %v253 = vadd.f32 %v237, 3.0
  %v254 = vrsqrt.pop %v246
  %v255 = vrsqrt.pop %v247
  %v256 = vrsqrt.pop %v248
  %v257 = vrsqrt.pop %v249
  %v258 = vrsqrt.pop %v250
  %v259 = vrsqrt.pop %v251
  %v260 = vrsqrt.pop %v252
  %v261 = vrsqrt.pop %v253
  %v262 = vmul.f32 %v238, %v254
  %v263 = vmul.f32 %v239, %v255
  %v264 = vmul.f32 %v240, %v256
  %v265 = vmul.f32 %v241, %v257
  %v266 = vmul.f32 %v242, %v258
  %v267 = vmul.f32 %v243, %v259
  %v268 = vmul.f32 %v244, %v260
  %v269 = vmul.f32 %v245, %v261
  %271 = vset.pattern.permute.xlu0 0
  %272 = vperm.xlu0 %271, %v262
  %v273 = vpop.permute.xlu0 %272
  %276 = vset.pattern.permute.xlu0 0
  %277 = vperm.xlu0 %276, %v263
  %v278 = vpop.permute.xlu0 %277
  %281 = vset.pattern.permute.xlu0 0
  %282 = vperm.xlu0 %281, %v264
  %v283 = vpop.permute.xlu0 %282
  %286 = vset.pattern.permute.xlu0 0
  %287 = vperm.xlu0 %286, %v265
  %v288 = vpop.permute.xlu0 %287
  %291 = vset.pattern.permute.xlu0 0
  %292 = vperm.xlu0 %291, %v266
  %v293 = vpop.permute.xlu0 %292
  %296 = vset.pattern.permute.xlu0 0
  %297 = vperm.xlu0 %296, %v267
  %v298 = vpop.permute.xlu0 %297
  %301 = vset.pattern.permute.xlu0 0
  %302 = vperm.xlu0 %301, %v268
  %v303 = vpop.permute.xlu0 %302
  %306 = vset.pattern.permute.xlu0 0
  %307 = vperm.xlu0 %306, %v269
  %v308 = vpop.permute.xlu0 %307
  %v310 = vmul.f32 %v110, %v273
  %v311 = vmul.f32 %v111, %v273
  %v312 = vmul.f32 %v112, %v278
  %v313 = vmul.f32 %v113, %v278
  %v314 = vmul.f32 %v114, %v283
  %v315 = vmul.f32 %v115, %v283
  %v316 = vmul.f32 %v116, %v288
  %v317 = vmul.f32 %v117, %v288
  %v318 = vmul.f32 %v118, %v293
  %v319 = vmul.f32 %v119, %v293
  %v320 = vmul.f32 %v120, %v298
  %v321 = vmul.f32 %v121, %v298
  %v322 = vmul.f32 %v122, %v303
  %v323 = vmul.f32 %v123, %v303
  %v324 = vmul.f32 %v124, %v308
  %v325 = vmul.f32 %v125, %v308
  %v326 = vmul.f32 %v126, %v273
  %v327 = vmul.f32 %v127, %v273
  %v328 = vmul.f32 %v128, %v278
  %v329 = vmul.f32 %v129, %v278
  %v330 = vmul.f32 %v130, %v283
  %v331 = vmul.f32 %v131, %v283
  %v332 = vmul.f32 %v132, %v288
  %v333 = vmul.f32 %v133, %v288
  %v334 = vmul.f32 %v134, %v293
  %v335 = vmul.f32 %v135, %v293
  %v336 = vmul.f32 %v136, %v298
  %v337 = vmul.f32 %v137, %v298
  %v338 = vmul.f32 %v138, %v303
  %v339 = vmul.f32 %v139, %v303
  %v340 = vmul.f32 %v140, %v308
  %v341 = vmul.f32 %v141, %v308
  %v342 = vld [vmem:[%s2] sm:$0xff]
  %v343 = vld [vmem:[%s2 + $0x8] sm:$0xff]
  %v344 = vld [vmem:[%s2 + $0x10] sm:$0xff]
  %v345 = vld [vmem:[%s2 + $0x18] sm:$0xff]
  %v346 = vld [vmem:[%s2 + $0x20] sm:$0xff]
  %v347 = vld [vmem:[%s2 + $0x28] sm:$0xff]
  %v348 = vld [vmem:[%s2 + $0x30] sm:$0xff]
  %v349 = vld [vmem:[%s2 + $0x38] sm:$0xff]
  %351 = vset.pattern.permute.xlu0 0
  %352 = vperm.xlu0 %351, %v342
  %v353 = vpop.permute.xlu0 %352
  %356 = vset.pattern.permute.xlu0 0
  %357 = vperm.xlu0 %356, %v343
  %v358 = vpop.permute.xlu0 %357
  %361 = vset.pattern.permute.xlu0 0
  %362 = vperm.xlu0 %361, %v344
  %v363 = vpop.permute.xlu0 %362
  %366 = vset.pattern.permute.xlu0 0
  %367 = vperm.xlu0 %366, %v345
  %v368 = vpop.permute.xlu0 %367
  %371 = vset.pattern.permute.xlu0 0
  %372 = vperm.xlu0 %371, %v346
  %v373 = vpop.permute.xlu0 %372
  %376 = vset.pattern.permute.xlu0 0
  %377 = vperm.xlu0 %376, %v347
  %v378 = vpop.permute.xlu0 %377
  %381 = vset.pattern.permute.xlu0 0
  %382 = vperm.xlu0 %381, %v348
  %v383 = vpop.permute.xlu0 %382
  %386 = vset.pattern.permute.xlu0 0
  %387 = vperm.xlu0 %386, %v349
  %v388 = vpop.permute.xlu0 %387
  %v390 = vadd.f32 %v310, %v353
  %v391 = vadd.f32 %v311, %v353
  %v392 = vadd.f32 %v312, %v358
  %v393 = vadd.f32 %v313, %v358
  %v394 = vadd.f32 %v314, %v363
  %v395 = vadd.f32 %v315, %v363
  %v396 = vadd.f32 %v316, %v368
  %v397 = vadd.f32 %v317, %v368
  %v398 = vadd.f32 %v318, %v373
  %v399 = vadd.f32 %v319, %v373
  %v400 = vadd.f32 %v320, %v378
  %v401 = vadd.f32 %v321, %v378
  %v402 = vadd.f32 %v322, %v383
  %v403 = vadd.f32 %v323, %v383
  %v404 = vadd.f32 %v324, %v388
  %v405 = vadd.f32 %v325, %v388
  %v406 = vadd.f32 %v326, %v353
  %v407 = vadd.f32 %v327, %v353
  %v408 = vadd.f32 %v328, %v358
  %v409 = vadd.f32 %v329, %v358
  %v410 = vadd.f32 %v330, %v363
  %v411 = vadd.f32 %v331, %v363
  %v412 = vadd.f32 %v332, %v368
  %v413 = vadd.f32 %v333, %v368
  %v414 = vadd.f32 %v334, %v373
  %v415 = vadd.f32 %v335, %v373
  %v416 = vadd.f32 %v336, %v378
  %v417 = vadd.f32 %v337, %v378
  %v418 = vadd.f32 %v338, %v383
  %v419 = vadd.f32 %v339, %v383
  %v420 = vadd.f32 %v340, %v388
  %v421 = vadd.f32 %v341, %v388
  %v422 = vxor.u32 %v390, 2147483648
  %v423 = vxor.u32 %v391, 2147483648
  %v424 = vxor.u32 %v392, 2147483648
  %v425 = vxor.u32 %v393, 2147483648
  %v426 = vxor.u32 %v394, 2147483648
  %v427 = vxor.u32 %v395, 2147483648
  %v428 = vxor.u32 %v396, 2147483648
  %v429 = vxor.u32 %v397, 2147483648
  %v430 = vxor.u32 %v398, 2147483648
  %v431 = vxor.u32 %v399, 2147483648
  %v432 = vxor.u32 %v400, 2147483648
  %v433 = vxor.u32 %v401, 2147483648
  %v434 = vxor.u32 %v402, 2147483648
  %v435 = vxor.u32 %v403, 2147483648
  %v436 = vxor.u32 %v404, 2147483648
  %v437 = vxor.u32 %v405, 2147483648
  %v438 = vxor.u32 %v406, 2147483648
  %v439 = vxor.u32 %v407, 2147483648
  %v440 = vxor.u32 %v408, 2147483648
  %v441 = vxor.u32 %v409, 2147483648
  %v442 = vxor.u32 %v410, 2147483648
  %v443 = vxor.u32 %v411, 2147483648
  %v444 = vxor.u32 %v412, 2147483648
  %v445 = vxor.u32 %v413, 2147483648
  %v446 = vxor.u32 %v414, 2147483648
  %v447 = vxor.u32 %v415, 2147483648
  %v448 = vxor.u32 %v416, 2147483648
  %v449 = vxor.u32 %v417, 2147483648
  %v450 = vxor.u32 %v418, 2147483648
  %v451 = vxor.u32 %v419, 2147483648
  %v452 = vxor.u32 %v420, 2147483648
  %v453 = vxor.u32 %v421, 2147483648
  %v454 = vmul.f32 %v422, 1.442695
  %v455 = vpow.pop %v454
  %v456 = vmul.f32 %v423, 1.442695
  %v457 = vpow.pop %v456
  %v458 = vmul.f32 %v424, 1.442695
  %v459 = vpow.pop %v458
  %v460 = vmul.f32 %v425, 1.442695
  %v461 = vpow.pop %v460
  %v462 = vmul.f32 %v426, 1.442695
  %v463 = vpow.pop %v462
  %v464 = vmul.f32 %v427, 1.442695
  %v465 = vpow.pop %v464
  %v466 = vmul.f32 %v428, 1.442695
  %v467 = vpow.pop %v466
  %v468 = vmul.f32 %v429, 1.442695
  %v469 = vpow.pop %v468
  %v470 = vmul.f32 %v430, 1.442695
  %v471 = vpow.pop %v470
  %v472 = vmul.f32 %v431, 1.442695
  %v473 = vpow.pop %v472
  %v474 = vmul.f32 %v432, 1.442695
  %v475 = vpow.pop %v474
  %v476 = vmul.f32 %v433, 1.442695
  %v477 = vpow.pop %v476
  %v478 = vmul.f32 %v434, 1.442695
  %v479 = vpow.pop %v478
  %v480 = vmul.f32 %v435, 1.442695
  %v481 = vpow.pop %v480
  %v482 = vmul.f32 %v436, 1.442695
  %v483 = vpow.pop %v482
  %v484 = vmul.f32 %v437, 1.442695
  %v485 = vpow.pop %v484
  %v486 = vmul.f32 %v438, 1.442695
  %v487 = vpow.pop %v486
  %v488 = vmul.f32 %v439, 1.442695
  %v489 = vpow.pop %v488
  %v490 = vmul.f32 %v440, 1.442695
  %v491 = vpow.pop %v490
  %v492 = vmul.f32 %v441, 1.442695
  %v493 = vpow.pop %v492
  %v494 = vmul.f32 %v442, 1.442695
  %v495 = vpow.pop %v494
  %v496 = vmul.f32 %v443, 1.442695
  %v497 = vpow.pop %v496
  %v498 = vmul.f32 %v444, 1.442695
  %v499 = vpow.pop %v498
  %v500 = vmul.f32 %v445, 1.442695
  %v501 = vpow.pop %v500
  %v502 = vmul.f32 %v446, 1.442695
  %v503 = vpow.pop %v502
  %v504 = vmul.f32 %v447, 1.442695
  %v505 = vpow.pop %v504
  %v506 = vmul.f32 %v448, 1.442695
  %v507 = vpow.pop %v506
  %v508 = vmul.f32 %v449, 1.442695
  %v509 = vpow.pop %v508
  %v510 = vmul.f32 %v450, 1.442695
  %v511 = vpow.pop %v510
  %v512 = vmul.f32 %v451, 1.442695
  %v513 = vpow.pop %v512
  %v514 = vmul.f32 %v452, 1.442695
  %v515 = vpow.pop %v514
  %v516 = vmul.f32 %v453, 1.442695
  %v517 = vpow.pop %v516
  %v518 = vadd.f32 %v455, 1.0
  %v519 = vadd.f32 %v457, 1.0
  %v520 = vadd.f32 %v459, 1.0
  %v521 = vadd.f32 %v461, 1.0
  %v522 = vadd.f32 %v463, 1.0
  %v523 = vadd.f32 %v465, 1.0
  %v524 = vadd.f32 %v467, 1.0
  %v525 = vadd.f32 %v469, 1.0
  %v526 = vadd.f32 %v471, 1.0
  %v527 = vadd.f32 %v473, 1.0
  %v528 = vadd.f32 %v475, 1.0
  %v529 = vadd.f32 %v477, 1.0
  %v530 = vadd.f32 %v479, 1.0
  %v531 = vadd.f32 %v481, 1.0
  %v532 = vadd.f32 %v483, 1.0
  %v533 = vadd.f32 %v485, 1.0
  %v534 = vadd.f32 %v487, 1.0
  %v535 = vadd.f32 %v489, 1.0
  %v536 = vadd.f32 %v491, 1.0
  %v537 = vadd.f32 %v493, 1.0
  %v538 = vadd.f32 %v495, 1.0
  %v539 = vadd.f32 %v497, 1.0
  %v540 = vadd.f32 %v499, 1.0
  %v541 = vadd.f32 %v501, 1.0
  %v542 = vadd.f32 %v503, 1.0
  %v543 = vadd.f32 %v505, 1.0
  %v544 = vadd.f32 %v507, 1.0
  %v545 = vadd.f32 %v509, 1.0
  %v546 = vadd.f32 %v511, 1.0
  %v547 = vadd.f32 %v513, 1.0
  %v548 = vadd.f32 %v515, 1.0
  %v549 = vadd.f32 %v517, 1.0
  %v550 = vrcp.pop %v518
  %v551 = vmul.f32 1.0, %v550
  %v552 = vrcp.pop %v519
  %v553 = vmul.f32 1.0, %v552
  %v554 = vrcp.pop %v520
  %v555 = vmul.f32 1.0, %v554
  %v556 = vrcp.pop %v521
  %v557 = vmul.f32 1.0, %v556
  %v558 = vrcp.pop %v522
  %v559 = vmul.f32 1.0, %v558
  %v560 = vrcp.pop %v523
  %v561 = vmul.f32 1.0, %v560
  %v562 = vrcp.pop %v524
  %v563 = vmul.f32 1.0, %v562
  %v564 = vrcp.pop %v525
  %v565 = vmul.f32 1.0, %v564
  %v566 = vrcp.pop %v526
  %v567 = vmul.f32 1.0, %v566
  %v568 = vrcp.pop %v527
  %v569 = vmul.f32 1.0, %v568
  %v570 = vrcp.pop %v528
  %v571 = vmul.f32 1.0, %v570
  %v572 = vrcp.pop %v529
  %v573 = vmul.f32 1.0, %v572
  %v574 = vrcp.pop %v530
  %v575 = vmul.f32 1.0, %v574
  %v576 = vrcp.pop %v531
  %v577 = vmul.f32 1.0, %v576
  %v578 = vrcp.pop %v532
  %v579 = vmul.f32 1.0, %v578
  %v580 = vrcp.pop %v533
  %v581 = vmul.f32 1.0, %v580
  %v582 = vrcp.pop %v534
  %v583 = vmul.f32 1.0, %v582
  %v584 = vrcp.pop %v535
  %v585 = vmul.f32 1.0, %v584
  %v586 = vrcp.pop %v536
  %v587 = vmul.f32 1.0, %v586
  %v588 = vrcp.pop %v537
  %v589 = vmul.f32 1.0, %v588
  %v590 = vrcp.pop %v538
  %v591 = vmul.f32 1.0, %v590
  %v592 = vrcp.pop %v539
  %v593 = vmul.f32 1.0, %v592
  %v594 = vrcp.pop %v540
  %v595 = vmul.f32 1.0, %v594
  %v596 = vrcp.pop %v541
  %v597 = vmul.f32 1.0, %v596
  %v598 = vrcp.pop %v542
  %v599 = vmul.f32 1.0, %v598
  %v600 = vrcp.pop %v543
  %v601 = vmul.f32 1.0, %v600
  %v602 = vrcp.pop %v544
  %v603 = vmul.f32 1.0, %v602
  %v604 = vrcp.pop %v545
  %v605 = vmul.f32 1.0, %v604
  %v606 = vrcp.pop %v546
  %v607 = vmul.f32 1.0, %v606
  %v608 = vrcp.pop %v547
  %v609 = vmul.f32 1.0, %v608
  %v610 = vrcp.pop %v548
  %v611 = vmul.f32 1.0, %v610
  %v612 = vrcp.pop %v549
  %v613 = vmul.f32 1.0, %v612
  %v614 = vmul.f32 %v390, %v551
  %v615 = vmul.f32 %v391, %v553
  %v616 = vmul.f32 %v392, %v555
  %v617 = vmul.f32 %v393, %v557
  %v618 = vmul.f32 %v394, %v559
  %v619 = vmul.f32 %v395, %v561
  %v620 = vmul.f32 %v396, %v563
  %v621 = vmul.f32 %v397, %v565
  %v622 = vmul.f32 %v398, %v567
  %v623 = vmul.f32 %v399, %v569
  %v624 = vmul.f32 %v400, %v571
  %v625 = vmul.f32 %v401, %v573
  %v626 = vmul.f32 %v402, %v575
  %v627 = vmul.f32 %v403, %v577
  %v628 = vmul.f32 %v404, %v579
  %v629 = vmul.f32 %v405, %v581
  %v630 = vmul.f32 %v406, %v583
  %v631 = vmul.f32 %v407, %v585
  %v632 = vmul.f32 %v408, %v587
  %v633 = vmul.f32 %v409, %v589
  %v634 = vmul.f32 %v410, %v591
  %v635 = vmul.f32 %v411, %v593
  %v636 = vmul.f32 %v412, %v595
  %v637 = vmul.f32 %v413, %v597
  %v638 = vmul.f32 %v414, %v599
  %v639 = vmul.f32 %v415, %v601
  %v640 = vmul.f32 %v416, %v603
  %v641 = vmul.f32 %v417, %v605
  %v642 = vmul.f32 %v418, %v607
  %v643 = vmul.f32 %v419, %v609
  %v644 = vmul.f32 %v420, %v611
  %v645 = vmul.f32 %v421, %v613
  %646 = vst [vmem:[%s3] sm:$0xff] %v614
  %647 = vst [vmem:[%s3 + $0x8] sm:$0xff] %v615
  %648 = vst [vmem:[%s3 + $0x10] sm:$0xff] %v616
  %649 = vst [vmem:[%s3 + $0x18] sm:$0xff] %v617
  %650 = vst [vmem:[%s3 + $0x20] sm:$0xff] %v618
  %651 = vst [vmem:[%s3 + $0x28] sm:$0xff] %v619
  %652 = vst [vmem:[%s3 + $0x30] sm:$0xff] %v620
  %653 = vst [vmem:[%s3 + $0x38] sm:$0xff] %v621
  %654 = vst [vmem:[%s3 + $0x40] sm:$0xff] %v622
  %655 = vst [vmem:[%s3 + $0x48] sm:$0xff] %v623
  %656 = vst [vmem:[%s3 + $0x50] sm:$0xff] %v624
  %657 = vst [vmem:[%s3 + $0x58] sm:$0xff] %v625
  %658 = vst [vmem:[%s3 + $0x60] sm:$0xff] %v626
  %659 = vst [vmem:[%s3 + $0x68] sm:$0xff] %v627
  %660 = vst [vmem:[%s3 + $0x70] sm:$0xff] %v628
  %661 = vst [vmem:[%s3 + $0x78] sm:$0xff] %v629
  %662 = vst [vmem:[%s3 + $0x80] sm:$0xff] %v630
  %663 = vst [vmem:[%s3 + $0x88] sm:$0xff] %v631
  %664 = vst [vmem:[%s3 + $0x90] sm:$0xff] %v632
  %665 = vst [vmem:[%s3 + $0x98] sm:$0xff] %v633
  %666 = vst [vmem:[%s3 + $0xa0] sm:$0xff] %v634
  %667 = vst [vmem:[%s3 + $0xa8] sm:$0xff] %v635
  %668 = vst [vmem:[%s3 + $0xb0] sm:$0xff] %v636
  %669 = vst [vmem:[%s3 + $0xb8] sm:$0xff] %v637
  %670 = vst [vmem:[%s3 + $0xc0] sm:$0xff] %v638
  %671 = vst [vmem:[%s3 + $0xc8] sm:$0xff] %v639
  %672 = vst [vmem:[%s3 + $0xd0] sm:$0xff] %v640
  %673 = vst [vmem:[%s3 + $0xd8] sm:$0xff] %v641
  %674 = vst [vmem:[%s3 + $0xe0] sm:$0xff] %v642
  %675 = vst [vmem:[%s3 + $0xe8] sm:$0xff] %v643
  %676 = vst [vmem:[%s3 + $0xf0] sm:$0xff] %v644
  %677 = vst [vmem:[%s3 + $0xf8] sm:$0xff] %v645
  // Predicated region
  $region14: #{bn_silu.1} parent=0 // pred_check
    _
  $region15: #{bn_silu.1} parent=0 // pred_check_branch
    %679 = sbr.rel (0) target = $region17
  $region16: #{bn_silu.1} parent=0 // pred_region
    _
  $region17: #{bn_silu.1} parent=0 // pred_fallthru
    _
  // Predicated region
  $region18: #{bn_silu.1} parent=0 // pred_check
    _
  $region19: #{bn_silu.1} parent=0 // pred_check_branch
    %681 = sbr.rel (0) target = $region21
  $region20: #{bn_silu.1} parent=0 // pred_region
    _
  $region21: #{bn_silu.1} parent=0 // pred_fallthru
    _

</llo_original>
